<compile_context>
chip_gen: v5e
topology: v5e:2x2
jax: 0.10.0
libtpu: 0.0.40
codegen_flags: <defaults>
</compile_context>

<pallas_src>
import functools

import jax
import jax.numpy as jnp
from jax import lax
from jax.experimental import pallas as pl
from jax.experimental.pallas import tpu as pltpu


def _round_up(n: int, m: int) -> int:
    return ((n + m - 1) // m) * m


def _ff_ln_residual_kernel(x_ref, w1_ref, b1_ref, w2_ref, b2_ref,
                           alpha_ref, beta_ref, o_ref, *, eps, h_valid):
    """One TM-row tile: out = x + LayerNorm(Linear2(relu(Linear1(x))))."""
    x = x_ref[...].astype(jnp.float32)                       # [TM, Hp] f32 residual path
    h_pad = x.shape[-1]

    # --- FeedForward sublayer (dropout = identity in eval mode) -------------
    # bf16 operands on the MXU, f32 accumulation.
    h1 = jnp.dot(x.astype(jnp.bfloat16), w1_ref[...],
                 preferred_element_type=jnp.float32) + b1_ref[...]      # [TM, Fp]
    h1 = jnp.maximum(h1, 0.0)                                           # ReLU
    y = jnp.dot(h1.astype(jnp.bfloat16), w2_ref[...],
                preferred_element_type=jnp.float32) + b2_ref[...]       # [TM, Hp]

    # --- LayerNormalization (torch: unbiased std, divide by (std + eps)) ----
    # Padded lanes of y are exactly zero (zero-padded W2 columns / b2), so the plain
    # sum already gives the correct mean over the h_valid real lanes.
    mean = jnp.sum(y, axis=-1, keepdims=True) * (1.0 / h_valid)         # [TM, 1]
    diff = y - mean
    if h_valid != h_pad:
        lane = lax.broadcasted_iota(jnp.int32, (1, h_pad), 1)
        diff = jnp.where(lane < h_valid, diff, 0.0)   # mask pad lanes for the variance
    var = jnp.sum(diff * diff, axis=-1, keepdims=True) * (1.0 / (h_valid - 1))
    std = jnp.sqrt(var)
    # Exact per-row reciprocal on the [TM,1] statistics vector (cheap; keeps LayerNorm
    # accuracy at f32 level instead of the approximate EUP reciprocal).
    inv = 1.0 / (std + eps)
    normed = (diff * inv) * alpha_ref[...] + beta_ref[...]

    # --- dropout (eval => identity) + residual add ---------------------------
    o_ref[...] = (x + normed).astype(o_ref.dtype)


def transformer_ff_residual(x, w1, b1, w2, b2, alpha, beta, *,
                            eps=1e-6, tm_max=512):
    """out = x + LayerNorm(Linear2(relu(Linear1(x) + b1)) + b2)   (dropout = identity).

    x: [B, S, H]; w1: [H, F]; b1: [F]; w2: [F, H]; b2/alpha/beta: [H].

    tm_max: row-tile size. 512 rows works well across generations; on v5e keep it a
    multiple of 128 and >= 256; on v7x (64 MiB VMEM/TC) drop to 256 for very large d_ff.
    """
    B, S, H = x.shape
    F = w1.shape[1]
    assert H >= 2, "unbiased std divides by (H - 1); H must be >= 2"

    rows = B * S
    Hp = _round_up(H, 128)                     # lane-dense hidden dim
    Fp = _round_up(F, 128)                     # lane-dense d_ff
    tm = min(tm_max, _round_up(rows, 8))       # row tile (second-to-last dim % 8 == 0)
    n_tiles = pl.cdiv(rows, tm)
    rows_p = n_tiles * tm

    # Zero-pad rows and lanes; padded W/b/alpha/beta lanes are zero so padded output
    # lanes come out exactly zero and are sliced off below.
    x2 = jnp.pad(x.reshape(rows, H).astype(jnp.float32),
                 ((0, rows_p - rows), (0, Hp - H)))
    w1p = jnp.pad(w1, ((0, Hp - H), (0, Fp - F))).astype(jnp.bfloat16)
    w2p = jnp.pad(w2, ((0, Fp - F), (0, Hp - H))).astype(jnp.bfloat16)
    b1p = jnp.pad(b1, (0, Fp - F)).reshape(1, Fp).astype(jnp.float32)
    b2p = jnp.pad(b2, (0, Hp - H)).reshape(1, Hp).astype(jnp.float32)
    alphap = jnp.pad(alpha, (0, Hp - H)).reshape(1, Hp).astype(jnp.float32)
    betap = jnp.pad(beta, (0, Hp - H)).reshape(1, Hp).astype(jnp.float32)

    kernel = functools.partial(_ff_ln_residual_kernel, eps=eps, h_valid=H)

    out = pl.pallas_call(
        kernel,
        out_shape=jax.ShapeDtypeStruct((rows_p, Hp), x.dtype),
        grid_spec=pltpu.PrefetchScalarGridSpec(
            num_scalar_prefetch=0,
            grid=(n_tiles,),
            in_specs=[
                pl.BlockSpec((tm, Hp), lambda i: (i, 0)),    # x: streamed row tiles
                pl.BlockSpec((Hp, Fp), lambda i: (0, 0)),    # W1: resident constant block
                pl.BlockSpec((1, Fp), lambda i: (0, 0)),     # b1
                pl.BlockSpec((Fp, Hp), lambda i: (0, 0)),    # W2
                pl.BlockSpec((1, Hp), lambda i: (0, 0)),     # b2
                pl.BlockSpec((1, Hp), lambda i: (0, 0)),     # alpha
                pl.BlockSpec((1, Hp), lambda i: (0, 0)),     # beta
            ],
            out_specs=pl.BlockSpec((tm, Hp), lambda i: (i, 0)),
        ),
        compiler_params=pltpu.CompilerParams(
            # Row tiles are independent -> shard the loop across v7x's two TensorCores.
            dimension_semantics=("parallel",),
            # Explicit scoped-VMEM budget (>32 MiB default, < v7x's 64 MiB physical).
            vmem_limit_bytes=48 * 1024 * 1024,
        ),
    )(x2, w1p, b1p, w2p, b2p, alphap, betap)

    return out[:rows, :H].reshape(B, S, H)


def _reference(x, w1, b1, w2, b2, alpha, beta, eps=1e-6, bf16_matmul=False):
    """Pure-JAX mirror of the PyTorch sub-block (optionally with the kernel's bf16 matmuls)."""
    xf = x.astype(jnp.float32)
    if bf16_matmul:
        h1 = jnp.dot(xf.astype(jnp.bfloat16), w1.astype(jnp.bfloat16),
                     preferred_element_type=jnp.float32) + b1
    else:
        h1 = xf @ w1 + b1
    h1 = jnp.maximum(h1, 0.0)                    # relu; dropout = identity (eval)
    if bf16_matmul:
        y = jnp.dot(h1.astype(jnp.bfloat16), w2.astype(jnp.bfloat16),
                    preferred_element_type=jnp.float32) + b2
    else:
        y = h1 @ w2 + b2
    mean = jnp.mean(y, axis=-1, keepdims=True)
    diff = y - mean
    var = jnp.sum(diff * diff, axis=-1, keepdims=True) / (y.shape[-1] - 1)
    std = jnp.sqrt(var)
    normed = alpha * diff / (std + eps) + beta
    return (xf + normed).astype(x.dtype)


def _run_case(B, S, H, F, key):
    k = jax.random.split(key, 5)
    x = jax.random.normal(k[0], (B, S, H), dtype=jnp.float32)
    w1 = jax.random.normal(k[1], (H, F), dtype=jnp.float32) * 0.05
    b1 = jax.random.normal(k[2], (F,), dtype=jnp.float32) * 0.05
    w2 = jax.random.normal(k[3], (F, H), dtype=jnp.float32) * 0.05
    b2 = jax.random.normal(k[4], (H,), dtype=jnp.float32) * 0.05
    alpha = jnp.ones((H,), dtype=jnp.float32)    # LayerNormalization: alpha = ones
    beta = jnp.zeros((H,), dtype=jnp.float32)    # LayerNormalization: bias  = zeros

    out = jax.block_until_ready(transformer_ff_residual(x, w1, b1, w2, b2, alpha, beta))
    assert out.shape == (B, S, H), out.shape

    # Check vs a reference that mirrors the kernel's bf16-matmul / f32-accum path
    # (headroom for MXU-vs-XLA accumulation-order differences after LayerNorm).
    ref_bf16 = _reference(x, w1, b1, w2, b2, alpha, beta, bf16_matmul=True)
    assert jnp.allclose(out, ref_bf16, atol=2e-2, rtol=2e-2), float(
        jnp.max(jnp.abs(out - ref_bf16)))
    # Looser check vs exact torch-semantics f32 reference (bf16 matmul rounding only).
    ref_f32 = _reference(x, w1, b1, w2, b2, alpha, beta, bf16_matmul=False)
    assert jnp.allclose(out, ref_f32, atol=6e-2, rtol=6e-2), float(
        jnp.max(jnp.abs(out - ref_f32)))


if __name__ == "__main__":
    key = jax.random.PRNGKey(0)
    k1, k2 = jax.random.split(key)
    # Spec-like toy shape (hidden=32, d_ff=64): exercises the H/F lane-padding + mask path.
    _run_case(2, 8, 32, 64, k1)
    # Lane-dense shape (hidden/d_ff multiples of 128): the recommended production path.
    _run_case(2, 8, 128, 256, k2)
    print("KERNEL_OK")
</pallas_src>

<mosaic_0001>
module attributes {stable_mosaic.version = 11 : i64} {
  func.func @_ff_ln_residual_kernel(%arg0: i32, %arg1: memref<16x128xf32, #tpu.memory_space<vmem>>, %arg2: memref<128x128xbf16, #tpu.memory_space<vmem>>, %arg3: memref<1x128xf32, #tpu.memory_space<vmem>>, %arg4: memref<128x128xbf16, #tpu.memory_space<vmem>>, %arg5: memref<1x128xf32, #tpu.memory_space<vmem>>, %arg6: memref<1x128xf32, #tpu.memory_space<vmem>>, %arg7: memref<1x128xf32, #tpu.memory_space<vmem>>, %arg8: memref<16x128xf32, #tpu.memory_space<vmem>>) attributes {dimension_semantics = [#tpu.dimension_semantics<parallel>], iteration_bounds = array<i64: 1>, scalar_prefetch = 0 : i64, scratch_operands = 0 : i64, tpu.core_type = #tpu.core_type<tc>, window_params = [{transform_indices = @transform_0, window_bounds = array<i64: 16, 128>}, {pipeline_mode = #tpu.pipeline_mode<synchronous>, transform_indices = @transform_1, window_bounds = array<i64: 128, 128>}, {pipeline_mode = #tpu.pipeline_mode<synchronous>, transform_indices = @transform_2, window_bounds = array<i64: 1, 128>}, {pipeline_mode = #tpu.pipeline_mode<synchronous>, transform_indices = @transform_3, window_bounds = array<i64: 128, 128>}, {pipeline_mode = #tpu.pipeline_mode<synchronous>, transform_indices = @transform_4, window_bounds = array<i64: 1, 128>}, {pipeline_mode = #tpu.pipeline_mode<synchronous>, transform_indices = @transform_5, window_bounds = array<i64: 1, 128>}, {pipeline_mode = #tpu.pipeline_mode<synchronous>, transform_indices = @transform_6, window_bounds = array<i64: 1, 128>}, {transform_indices = @transform_7, window_bounds = array<i64: 16, 128>}]} {
    %c0 = arith.constant 0 : index
    %c0_0 = arith.constant 0 : index
    %0 = vector.load %arg1[%c0, %c0_0] : memref<16x128xf32, #tpu.memory_space<vmem>>, vector<16x128xf32>
    %1 = arith.truncf %0 : vector<16x128xf32> to vector<16x128xbf16>
    %c0_1 = arith.constant 0 : index
    %c0_2 = arith.constant 0 : index
    %2 = vector.load %arg2[%c0_1, %c0_2] : memref<128x128xbf16, #tpu.memory_space<vmem>>, vector<128x128xbf16>
    %cst = arith.constant dense<0.000000e+00> : vector<16x128xf32>
    %3 = tpu.matmul %1, %2, %cst {dimension_numbers = #tpu.dot_dimension_numbers<[1], [0], [0], [1], [0, 0, 1, 1], [], []>} : vector<16x128xbf16>, vector<128x128xbf16>, vector<16x128xf32> -> vector<16x128xf32>
    %c0_3 = arith.constant 0 : index
    %c0_4 = arith.constant 0 : index
    %4 = vector.load %arg3[%c0_3, %c0_4] : memref<1x128xf32, #tpu.memory_space<vmem>>, vector<1x128xf32>
    %5 = vector.broadcast %4 : vector<1x128xf32> to vector<16x128xf32>
    %6 = arith.addf %3, %5 : vector<16x128xf32>
    %cst_5 = arith.constant 0.000000e+00 : f32
    %7 = vector.broadcast %cst_5 : f32 to vector<16x128xf32>
    %8 = arith.maximumf %6, %7 : vector<16x128xf32>
    %9 = arith.truncf %8 : vector<16x128xf32> to vector<16x128xbf16>
    %c0_6 = arith.constant 0 : index
    %c0_7 = arith.constant 0 : index
    %10 = vector.load %arg4[%c0_6, %c0_7] : memref<128x128xbf16, #tpu.memory_space<vmem>>, vector<128x128xbf16>
    %cst_8 = arith.constant dense<0.000000e+00> : vector<16x128xf32>
    %11 = tpu.matmul %9, %10, %cst_8 {dimension_numbers = #tpu.dot_dimension_numbers<[1], [0], [0], [1], [0, 0, 1, 1], [], []>} : vector<16x128xbf16>, vector<128x128xbf16>, vector<16x128xf32> -> vector<16x128xf32>
    %c0_9 = arith.constant 0 : index
    %c0_10 = arith.constant 0 : index
    %12 = vector.load %arg5[%c0_9, %c0_10] : memref<1x128xf32, #tpu.memory_space<vmem>>, vector<1x128xf32>
    %13 = vector.broadcast %12 : vector<1x128xf32> to vector<16x128xf32>
    %14 = arith.addf %11, %13 : vector<16x128xf32>
    %cst_11 = arith.constant dense<0.000000e+00> : vector<16xf32>
    %15 = vector.multi_reduction <add>, %14, %cst_11 [1] : vector<16x128xf32> to vector<16xf32>
    %16 = vector.shape_cast %15 : vector<16xf32> to vector<16x1xf32>
    %cst_12 = arith.constant 3.125000e-02 : f32
    %17 = vector.broadcast %cst_12 : f32 to vector<16x1xf32>
    %18 = arith.mulf %16, %17 : vector<16x1xf32>
    %19 = vector.broadcast %18 : vector<16x1xf32> to vector<16x128xf32>
    %20 = arith.subf %14, %19 : vector<16x128xf32>
    %21 = tpu.iota {dimensions = array<i32: 1>} : vector<1x128xi32>
    %c32_i32 = arith.constant 32 : i32
    %22 = vector.broadcast %c32_i32 : i32 to vector<1x128xi32>
    %23 = arith.cmpi slt, %21, %22 : vector<1x128xi32>
    %cst_13 = arith.constant 0.000000e+00 : f32
    %24 = vector.shape_cast %23 : vector<1x128xi1> to vector<1x128xi1>
    %25 = vector.broadcast %24 : vector<1x128xi1> to vector<16x128xi1>
    %26 = vector.broadcast %cst_13 : f32 to vector<16x128xf32>
    %27 = arith.select %25, %20, %26 : vector<16x128xi1>, vector<16x128xf32>
    %28 = arith.mulf %27, %27 : vector<16x128xf32>
    %cst_14 = arith.constant dense<0.000000e+00> : vector<16xf32>
    %29 = vector.multi_reduction <add>, %28, %cst_14 [1] : vector<16x128xf32> to vector<16xf32>
    %30 = vector.shape_cast %29 : vector<16xf32> to vector<16x1xf32>
    %cst_15 = arith.constant 0.0322580636 : f32
    %31 = vector.broadcast %cst_15 : f32 to vector<16x1xf32>
    %32 = arith.mulf %30, %31 : vector<16x1xf32>
    %33 = math.sqrt %32 : vector<16x1xf32>
    %cst_16 = arith.constant 9.99999997E-7 : f32
    %34 = vector.broadcast %cst_16 : f32 to vector<16x1xf32>
    %35 = arith.addf %33, %34 : vector<16x1xf32>
    %cst_17 = arith.constant 1.000000e+00 : f32
    %36 = vector.broadcast %cst_17 : f32 to vector<16x1xf32>
    %37 = arith.divf %36, %35 : vector<16x1xf32>
    %38 = vector.broadcast %37 : vector<16x1xf32> to vector<16x128xf32>
    %39 = arith.mulf %27, %38 : vector<16x128xf32>
    %c0_18 = arith.constant 0 : index
    %c0_19 = arith.constant 0 : index
    %40 = vector.load %arg6[%c0_18, %c0_19] : memref<1x128xf32, #tpu.memory_space<vmem>>, vector<1x128xf32>
    %41 = vector.broadcast %40 : vector<1x128xf32> to vector<16x128xf32>
    %42 = arith.mulf %39, %41 : vector<16x128xf32>
    %c0_20 = arith.constant 0 : index
    %c0_21 = arith.constant 0 : index
    %43 = vector.load %arg7[%c0_20, %c0_21] : memref<1x128xf32, #tpu.memory_space<vmem>>, vector<1x128xf32>
    %44 = vector.broadcast %43 : vector<1x128xf32> to vector<16x128xf32>
    %45 = arith.addf %42, %44 : vector<16x128xf32>
    %46 = arith.addf %0, %45 : vector<16x128xf32>
    %c0_22 = arith.constant 0 : index
    %c0_23 = arith.constant 0 : index
    %47 = vector.load %arg8[%c0_22, %c0_23] : memref<16x128xf32, #tpu.memory_space<vmem>>, vector<16x128xf32>
    tpu.vector_store %arg8[%c0_22, %c0_23], %46 {strides = array<i32>} : memref<16x128xf32, #tpu.memory_space<vmem>>, vector<16x128xf32>,
    return
  }
  func.func @transform_0(%arg0: i32) -> (i32, i32) {
    %c0_i32 = arith.constant 0 : i32
    %c0_i32_0 = arith.constant 0 : i32
    return %arg0, %c0_i32 : i32, i32
  }
  func.func @transform_1(%arg0: i32) -> (i32, i32) {
    %c0_i32 = arith.constant 0 : i32
    %c0_i32_0 = arith.constant 0 : i32
    %c0_i32_1 = arith.constant 0 : i32
    return %c0_i32, %c0_i32_0 : i32, i32
  }
  func.func @transform_2(%arg0: i32) -> (i32, i32) {
    %c0_i32 = arith.constant 0 : i32
    %c0_i32_0 = arith.constant 0 : i32
    %c0_i32_1 = arith.constant 0 : i32
    return %c0_i32, %c0_i32_0 : i32, i32
  }
  func.func @transform_3(%arg0: i32) -> (i32, i32) {
    %c0_i32 = arith.constant 0 : i32
    %c0_i32_0 = arith.constant 0 : i32
    %c0_i32_1 = arith.constant 0 : i32
    return %c0_i32, %c0_i32_0 : i32, i32
  }
  func.func @transform_4(%arg0: i32) -> (i32, i32) {
    %c0_i32 = arith.constant 0 : i32
    %c0_i32_0 = arith.constant 0 : i32
    %c0_i32_1 = arith.constant 0 : i32
    return %c0_i32, %c0_i32_0 : i32, i32
  }
  func.func @transform_5(%arg0: i32) -> (i32, i32) {
    %c0_i32 = arith.constant 0 : i32
    %c0_i32_0 = arith.constant 0 : i32
    %c0_i32_1 = arith.constant 0 : i32
    return %c0_i32, %c0_i32_0 : i32, i32
  }
  func.func @transform_6(%arg0: i32) -> (i32, i32) {
    %c0_i32 = arith.constant 0 : i32
    %c0_i32_0 = arith.constant 0 : i32
    %c0_i32_1 = arith.constant 0 : i32
    return %c0_i32, %c0_i32_0 : i32, i32
  }
  func.func @transform_7(%arg0: i32) -> (i32, i32) {
    %c0_i32 = arith.constant 0 : i32
    %c0_i32_0 = arith.constant 0 : i32
    return %arg0, %c0_i32 : i32, i32
  }
}

</mosaic_0001>

<llo_original>
// kernel: tpu_custom_call.1
$region0: #{tpu_custom_call.1}
  #allocation0 [shape = 'u32[]', space=smem, size = 0x4, offset = 0x4, fixed_abs, tag = 'smem constant byte address 0x4 - core index']
  #allocation1 [shape = 'u32[72,128]{1,0:T(1,128)}', space=vmem, size = 0x9000, scoped, tag = 'internal scratch']
  %s0 = inlined_call_operand.hbm [shape: f32[16,128], index: 0, kind: input, shape index: {}]
  %s1 = inlined_call_operand.hbm [shape: bf16[128,128], index: 1, kind: input, shape index: {}]
  %s2 = inlined_call_operand.vmem [shape: f32[1,128], index: 2, kind: input, shape index: {}]
  %s3 = inlined_call_operand.hbm [shape: bf16[128,128], index: 3, kind: input, shape index: {}]
  %s4 = inlined_call_operand.vmem [shape: f32[1,128], index: 4, kind: input, shape index: {}]
  %s5 = inlined_call_operand.vmem [shape: f32[1,128], index: 5, kind: input, shape index: {}]
  %s6 = inlined_call_operand.vmem [shape: f32[1,128], index: 6, kind: input, shape index: {}]
  %s7 = inlined_call_operand.hbm [shape: f32[16,128], index: 7, kind: output, shape index: {}]
  %s8 = sld [smem:[#allocation0]]
  $region50: #{tpu_custom_call.1} parent=0
    _
  %s10 = ssub.s32 1, %s8
  %s11 = scalar_select 0, %s10, %s8
  $region1: #{tpu_custom_call.1} parent=0
    #allocation2 [shape = 'u8[8192]{0}', space=vmem, size = 0x2000, scoped, tag = 'input window, operand 0, single buffered']
    #allocation3 [shape = 's32[1]{0}', space=sflag, size = 0x4, scoped, tag = 'scoped memory for tpu_custom_call.1']
    #allocation4 [shape = 's32[1]{0}', space=sflag, size = 0x4, scoped, tag = 'scoped memory for tpu_custom_call.1']
    #allocation5 [shape = 'u8[32768]{0}', space=vmem, size = 0x8000, scoped, tag = 'input window, operand 1, single buffered']
    #allocation6 [shape = 's32[1]{0}', space=sflag, size = 0x4, scoped, tag = 'scoped memory for tpu_custom_call.1']
    #allocation7 [shape = 'u8[32768]{0}', space=vmem, size = 0x8000, scoped, tag = 'input window, operand 3, single buffered']
    #allocation8 [shape = 'u8[8192]{0}', space=vmem, size = 0x2000, scoped, tag = 'output window, operand 0, single buffered']
    %12 = vsyncpa [#allocation3], 0
    %13 = vsyncpa [#allocation6], 0
    %14 = vsyncpa [#allocation4], 0
    // Predicated region
    $region2: #{tpu_custom_call.1} parent=1 // pred_check
      _
    $region3: #{tpu_custom_call.1} parent=1 // pred_check_branch
      %16 = sbr.rel (0) target = $region5
    $region4: #{tpu_custom_call.1} parent=1 // pred_region
      %18 = vsyncadd [#allocation3], 0
      %s19 = sshll.u32 %s0, 4
      %s20 = int_to_ptr.hbm [resolvable:$true] %s19
      %s21 = sshll.u32 [#allocation2], 4
      %s22 = int_to_ptr.vmem [resolvable:$true] %s21
      %27 = dma.hbm_to_vmem [thread:$0]  %s20, 256, %s22, [#allocation3], 128, 128, 8
    $region5: #{tpu_custom_call.1} parent=1 // pred_fallthru
      _
    // Predicated region
    $region6: #{tpu_custom_call.1} parent=1 // pred_check
      _
    $region7: #{tpu_custom_call.1} parent=1 // pred_check_branch
      %29 = sbr.rel (0) target = $region9
    $region8: #{tpu_custom_call.1} parent=1 // pred_region
      %31 = vsyncadd [#allocation6], 0
      %s32 = sshll.u32 %s1, 4
      %s33 = int_to_ptr.hbm [resolvable:$true] %s32
      %s34 = sshll.u32 [#allocation5], 4
      %s35 = int_to_ptr.vmem [resolvable:$true] %s34
      %40 = dma.hbm_to_vmem [thread:$0]  %s33, 1024, %s35, [#allocation6], 64, 64, 4
    $region9: #{tpu_custom_call.1} parent=1 // pred_fallthru
      _
    // Predicated region
    $region10: #{tpu_custom_call.1} parent=1 // pred_check
      _
    $region11: #{tpu_custom_call.1} parent=1 // pred_check_branch
      %42 = sbr.rel (0) target = $region13
    $region12: #{tpu_custom_call.1} parent=1 // pred_region
      _
    $region13: #{tpu_custom_call.1} parent=1 // pred_fallthru
      _
    // Predicated region
    $region14: #{tpu_custom_call.1} parent=1 // pred_check
      _
    $region15: #{tpu_custom_call.1} parent=1 // pred_check_branch
      %44 = sbr.rel (0) target = $region17
    $region16: #{tpu_custom_call.1} parent=1 // pred_region
      %46 = vsyncadd [#allocation6], 0
      %s47 = sshll.u32 %s3, 4
      %s48 = int_to_ptr.hbm [resolvable:$true] %s47
      %s49 = sshll.u32 [#allocation7], 4
      %s50 = int_to_ptr.vmem [resolvable:$true] %s49
      %55 = dma.hbm_to_vmem [thread:$0]  %s48, 1024, %s50, [#allocation6], 64, 64, 4
    $region17: #{tpu_custom_call.1} parent=1 // pred_fallthru
      _
    // Predicated region
    $region18: #{tpu_custom_call.1} parent=1 // pred_check
      _
    $region19: #{tpu_custom_call.1} parent=1 // pred_check_branch
      %57 = sbr.rel (0) target = $region21
    $region20: #{tpu_custom_call.1} parent=1 // pred_region
      _
    $region21: #{tpu_custom_call.1} parent=1 // pred_fallthru
      _
    // Predicated region
    $region22: #{tpu_custom_call.1} parent=1 // pred_check
      _
    $region23: #{tpu_custom_call.1} parent=1 // pred_check_branch
      %59 = sbr.rel (0) target = $region25
    $region24: #{tpu_custom_call.1} parent=1 // pred_region
      _
    $region25: #{tpu_custom_call.1} parent=1 // pred_fallthru
      _
    // Predicated region
    $region26: #{tpu_custom_call.1} parent=1 // pred_check
      _
    $region27: #{tpu_custom_call.1} parent=1 // pred_check_branch
      %61 = sbr.rel (0) target = $region29
    $region28: #{tpu_custom_call.1} parent=1 // pred_region
      _
    $region29: #{tpu_custom_call.1} parent=1 // pred_fallthru
      _
    // Predicated region
    $region30: #{tpu_custom_call.1} parent=1 // pred_check
      _
    $region31: #{tpu_custom_call.1} parent=1 // pred_check_branch
      %63 = sbr.rel (0) target = $region33
    $region32: #{tpu_custom_call.1} parent=1 // pred_region
      %65 = dma.done [#allocation3], 256
    $region33: #{tpu_custom_call.1} parent=1 // pred_fallthru
      _
    // Predicated region
    $region34: #{tpu_custom_call.1} parent=1 // pred_check
      _
    $region35: #{tpu_custom_call.1} parent=1 // pred_check_branch
      %67 = sbr.rel (0) target = $region37
    $region36: #{tpu_custom_call.1} parent=1 // pred_region
      %69 = dma.done [#allocation6], 1024
    $region37: #{tpu_custom_call.1} parent=1 // pred_fallthru
      _
    // Predicated region
    $region38: #{tpu_custom_call.1} parent=1 // pred_check
      _
    $region39: #{tpu_custom_call.1} parent=1 // pred_check_branch
      %71 = sbr.rel (0) target = $region41
    $region40: #{tpu_custom_call.1} parent=1 // pred_region
      %73 = dma.done [#allocation6], 1024
    $region41: #{tpu_custom_call.1} parent=1 // pred_fallthru
      _
    %v74 = vld [vmem:[#allocation2] sm:$0xff]
    %v75 = vld [vmem:[#allocation2 + $0x8] sm:$0xff]
    %v76 = vpack.c.bf16 %v75, %v74
    %v77 = vld [vmem:[#allocation5] sm:$0xf]
    %v78 = vld [vmem:[#allocation5 + $0x4] sm:$0xf]
    %v79 = vld [vmem:[#allocation5 + $0x8] sm:$0xf]
    %v80 = vld [vmem:[#allocation5 + $0xc] sm:$0xf]
    %v81 = vld [vmem:[#allocation5 + $0x10] sm:$0xf]
    %v82 = vld [vmem:[#allocation5 + $0x14] sm:$0xf]
    %v83 = vld [vmem:[#allocation5 + $0x18] sm:$0xf]
    %v84 = vld [vmem:[#allocation5 + $0x1c] sm:$0xf]
    %v85 = vld [vmem:[#allocation5 + $0x20] sm:$0xf]
    %v86 = vld [vmem:[#allocation5 + $0x24] sm:$0xf]
    %v87 = vld [vmem:[#allocation5 + $0x28] sm:$0xf]
    %v88 = vld [vmem:[#allocation5 + $0x2c] sm:$0xf]
    %v89 = vld [vmem:[#allocation5 + $0x30] sm:$0xf]
    %v90 = vld [vmem:[#allocation5 + $0x34] sm:$0xf]
    %v91 = vld [vmem:[#allocation5 + $0x38] sm:$0xf]
    %v92 = vld [vmem:[#allocation5 + $0x3c] sm:$0xf]
    %v93 = vld [vmem:[%s2] sm:$0x1]
    %v95 = vperm.slane %v93, 0
    %v113 = vunpack.c.l.b16 %v77
    %v114 = vunpack.c.l.b16 %v78
    %v115 = vunpack.c.l.b16 %v79
    %v116 = vunpack.c.l.b16 %v80
    %v117 = vunpack.c.l.b16 %v81
    %v118 = vunpack.c.l.b16 %v82
    %v119 = vunpack.c.l.b16 %v83
    %v120 = vunpack.c.l.b16 %v84
    %v121 = vunpack.c.l.b16 %v85
    %v122 = vunpack.c.l.b16 %v86
    %v123 = vunpack.c.l.b16 %v87
    %v124 = vunpack.c.l.b16 %v88
    %v125 = vunpack.c.l.b16 %v89
    %v126 = vunpack.c.l.b16 %v90
    %v127 = vunpack.c.l.b16 %v91
    %v128 = vunpack.c.l.b16 %v92
    %v129 = vpack.c.b16 %v114, %v113
    %v130 = vpack.c.b16 %v116, %v115
    %v131 = vpack.c.b16 %v118, %v117
    %v132 = vpack.c.b16 %v120, %v119
    %v133 = vpack.c.b16 %v122, %v121
    %v134 = vpack.c.b16 %v124, %v123
    %v135 = vpack.c.b16 %v126, %v125
    %v136 = vpack.c.b16 %v128, %v127
    %145 = vmatpush.bf16.msra.mxu0 %v136
    %146 = vmatpush.bf16.msra.mxu0 %v135
    %147 = vmatpush.bf16.msra.mxu0 %v134
    %148 = vmatpush.bf16.msra.mxu0 %v133
    %149 = vmatpush.bf16.msra.mxu0 %v132
    %150 = vmatpush.bf16.msra.mxu0 %v131
    %151 = vmatpush.bf16.msra.mxu0 %v130
    %152 = vmatpush.bf16.msra.mxu0 %v129
    %153 = vmatmul.bf16.gmra.mxu0 %v76
    %v154 = vpop.f32.mrf.mxu0
    %v155 = vadd.f32 %v95, %v154
    %v156 = vpop.f32.mrf.mxu0
    %v157 = vadd.f32 %v95, %v156
    %158 = vdwg.mxu0
    %v159 = vmax.f32 %v155, 0.0
    %v160 = vmax.f32 %v157, 0.0
    %v161 = vpack.c.bf16 %v160, %v159
    %v162 = vld [vmem:[#allocation7] sm:$0xf]
    %v163 = vld [vmem:[#allocation7 + $0x4] sm:$0xf]
    %v164 = vld [vmem:[#allocation7 + $0x8] sm:$0xf]
    %v165 = vld [vmem:[#allocation7 + $0xc] sm:$0xf]
    %v166 = vld [vmem:[#allocation7 + $0x10] sm:$0xf]
    %v167 = vld [vmem:[#allocation7 + $0x14] sm:$0xf]
    %v168 = vld [vmem:[#allocation7 + $0x18] sm:$0xf]
    %v169 = vld [vmem:[#allocation7 + $0x1c] sm:$0xf]
    %v170 = vld [vmem:[#allocation7 + $0x20] sm:$0xf]
    %v171 = vld [vmem:[#allocation7 + $0x24] sm:$0xf]
    %v172 = vld [vmem:[#allocation7 + $0x28] sm:$0xf]
    %v173 = vld [vmem:[#allocation7 + $0x2c] sm:$0xf]
    %v174 = vld [vmem:[#allocation7 + $0x30] sm:$0xf]
    %v175 = vld [vmem:[#allocation7 + $0x34] sm:$0xf]
    %v176 = vld [vmem:[#allocation7 + $0x38] sm:$0xf]
    %v177 = vld [vmem:[#allocation7 + $0x3c] sm:$0xf]
    %v178 = vld [vmem:[%s4] sm:$0x1]
    %v180 = vperm.slane %v178, 0
    %v198 = vunpack.c.l.b16 %v162
    %v199 = vunpack.c.l.b16 %v163
    %v200 = vunpack.c.l.b16 %v164
    %v201 = vunpack.c.l.b16 %v165
    %v202 = vunpack.c.l.b16 %v166
    %v203 = vunpack.c.l.b16 %v167
    %v204 = vunpack.c.l.b16 %v168
    %v205 = vunpack.c.l.b16 %v169
    %v206 = vunpack.c.l.b16 %v170
    %v207 = vunpack.c.l.b16 %v171
    %v208 = vunpack.c.l.b16 %v172
    %v209 = vunpack.c.l.b16 %v173
    %v210 = vunpack.c.l.b16 %v174
    %v211 = vunpack.c.l.b16 %v175
    %v212 = vunpack.c.l.b16 %v176
    %v213 = vunpack.c.l.b16 %v177
    %v214 = vpack.c.b16 %v199, %v198
    %v215 = vpack.c.b16 %v201, %v200
    %v216 = vpack.c.b16 %v203, %v202
    %v217 = vpack.c.b16 %v205, %v204
    %v218 = vpack.c.b16 %v207, %v206
    %v219 = vpack.c.b16 %v209, %v208
    %v220 = vpack.c.b16 %v211, %v210
    %v221 = vpack.c.b16 %v213, %v212
    %230 = vmatpush.bf16.msra.mxu0 %v221
    %231 = vmatpush.bf16.msra.mxu0 %v220
    %232 = vmatpush.bf16.msra.mxu0 %v219
    %233 = vmatpush.bf16.msra.mxu0 %v218
    %234 = vmatpush.bf16.msra.mxu0 %v217
    %235 = vmatpush.bf16.msra.mxu0 %v216
    %236 = vmatpush.bf16.msra.mxu0 %v215
    %237 = vmatpush.bf16.msra.mxu0 %v214
    %238 = vmatmul.bf16.gmra.mxu0 %v161
    %v239 = vpop.f32.mrf.mxu0
    %v240 = vadd.f32 %v180, %v239
    %v241 = vpop.f32.mrf.mxu0
    %v242 = vadd.f32 %v180, %v241
    %243 = vdwg.mxu0
    %244 = vadd.xlane.f32.xlu0 %v240
    %v245 = vpop.xlane.xlu0 %244
    %246 = vadd.xlane.f32.xlu0 %v242
    %v247 = vpop.xlane.xlu0 %246
    %v248 = vmul.f32 %v245, 0.03125
    %v249 = vmul.f32 %v247, 0.03125
    %v250 = vsub.f32 %v240, %v248
    %v251 = vsub.f32 %v242, %v249
    %v252 = vlaneseq
    %v253 = vand.u32 %v252, 127
    %vm254 = vcmp.lt.s32.totalorder %v253, 32
    %v255 = vsel %vm254, 1, 0
    %vm256 = vcmp.eq.s32.totalorder %v255, 1
    %v257 = vsel %vm256, %v250, 0.0
    %v258 = vsel %vm256, %v251, 0.0
    %v259 = vmul.f32 %v257, %v257
    %v260 = vmul.f32 %v258, %v258
    %261 = vadd.xlane.f32.xlu0 %v259
    %v262 = vpop.xlane.xlu0 %261
    %263 = vadd.xlane.f32.xlu0 %v260
    %v264 = vpop.xlane.xlu0 %263
    %v265 = vmul.f32 %v262, 0.032258064
    %v266 = vmul.f32 %v264, 0.032258064
    %v267 = vrsqrt.pop %v265
    %v268 = vmul.f32 %v267, %v265
    %v269 = vmul.f32 %v268, %v267
    %v270 = vmul.f32 0.5, %v269
    %v271 = vsub.f32 1.5, %v270
    %v272 = vmul.f32 %v267, %v271
    %v273 = vmul.f32 %v265, %v272
    %vm274 = vcmp.eq.f32.partialorder %v265, inf
    %v275 = vsel %vm274, %v265, %v273
    %vm276 = vcmp.eq.f32.partialorder %v265, 0.0
    %v277 = vand.u32 %v265, 2147483648
    %v278 = vsel %vm276, %v277, %v275
    %v279 = vrsqrt.pop %v266
    %v280 = vmul.f32 %v279, %v266
    %v281 = vmul.f32 %v280, %v279
    %v282 = vmul.f32 0.5, %v281
    %v283 = vsub.f32 1.5, %v282
    %v284 = vmul.f32 %v279, %v283
    %v285 = vmul.f32 %v266, %v284
    %vm286 = vcmp.eq.f32.partialorder %v266, inf
    %v287 = vsel %vm286, %v266, %v285
    %vm288 = vcmp.eq.f32.partialorder %v266, 0.0
    %v289 = vand.u32 %v266, 2147483648
    %v290 = vsel %vm288, %v289, %v287
    %v291 = vadd.f32 %v278, 1e-06
    %v292 = vadd.f32 %v290, 1e-06
    %v293 = vrcp.pop %v291
    %v294 = vmul.f32 %v291, %v293
    %v295 = vsub.f32 1.0, %v294
    %v296 = vmul.f32 %v293, %v295
    %v297 = vadd.f32 %v293, %v296
    %vm298 = vweird.f32 %v291
    %vm299 = vweird.f32 %v293
    %vm300 = vmor %vm298, %vm299
    %v301 = vsel %vm300, %v293, %v297
    %v302 = vand.u32 2147483647, %v291
    %vm303 = vcmp.eq.f32.partialorder %v302, 8.507059e+37
    %v304 = vand.u32 %v291, 2147483648
    %v305 = vor.u32 1.1754944e-38, %v304
    %v306 = vsel %vm303, %v305, %v301
    %v307 = vmul.f32 1.0, %v306
    %v308 = vrcp.pop %v292
    %v309 = vmul.f32 %v292, %v308
    %v310 = vsub.f32 1.0, %v309
    %v311 = vmul.f32 %v308, %v310
    %v312 = vadd.f32 %v308, %v311
    %vm313 = vweird.f32 %v292
    %vm314 = vweird.f32 %v308
    %vm315 = vmor %vm313, %vm314
    %v316 = vsel %vm315, %v308, %v312
    %v317 = vand.u32 2147483647, %v292
    %vm318 = vcmp.eq.f32.partialorder %v317, 8.507059e+37
    %v319 = vand.u32 %v292, 2147483648
    %v320 = vor.u32 1.1754944e-38, %v319
    %v321 = vsel %vm318, %v320, %v316
    %v322 = vmul.f32 1.0, %v321
    %v323 = vmul.f32 %v257, %v307
    %v324 = vmul.f32 %v258, %v322
    %v325 = vld [vmem:[%s5] sm:$0x1]
    %v327 = vperm.slane %v325, 0
    %v329 = vmul.f32 %v323, %v327
    %v330 = vmul.f32 %v324, %v327
    %v331 = vld [vmem:[%s6] sm:$0x1]
    %v333 = vperm.slane %v331, 0
    %v335 = vadd.f32 %v329, %v333
    %v336 = vadd.f32 %v330, %v333
    %v337 = vadd.f32 %v74, %v335
    %v338 = vadd.f32 %v75, %v336
    %339 = vst [vmem:[#allocation8] sm:$0xff] %v337
    %340 = vst [vmem:[#allocation8 + $0x8] sm:$0xff] %v338
    // Predicated region
    $region42: #{tpu_custom_call.1} parent=1 // pred_check
      _
    $region43: #{tpu_custom_call.1} parent=1 // pred_check_branch
      %342 = sbr.rel (0) target = $region45
    $region44: #{tpu_custom_call.1} parent=1 // pred_region
      %344 = vsyncadd [#allocation4], 0
      %s345 = sshll.u32 [#allocation8], 4
      %s346 = int_to_ptr.vmem [resolvable:$true] %s345
      %s347 = sshll.u32 %s7, 4
      %s348 = int_to_ptr.hbm [resolvable:$true] %s347
      %353 = dma.vmem_to_hbm [thread:$0]  %s346, 256, %s348, [#allocation4], 128, 128, 8
    $region45: #{tpu_custom_call.1} parent=1 // pred_fallthru
      _
    // Predicated region
    $region46: #{tpu_custom_call.1} parent=1 // pred_check
      _
    $region47: #{tpu_custom_call.1} parent=1 // pred_check_branch
      %355 = sbr.rel (0) target = $region49
    $region48: #{tpu_custom_call.1} parent=1 // pred_region
      %357 = dma.done [#allocation4], 256
    $region49: #{tpu_custom_call.1} parent=1 // pred_fallthru
      _
    %358 = vsyncpa [#allocation3], 1
    %359 = vsyncpa [#allocation6], 1
    %360 = vsyncpa [#allocation4], 1

</llo_original>
